<compile_context>
chip_gen: v5e
topology: v5e:2x2
jax: 0.10.0
libtpu: 0.0.40
codegen_flags: <defaults>
</compile_context>

<pallas_src>
import functools

import jax
import jax.numpy as jnp
from jax.experimental import pallas as pl
from jax.experimental.pallas import tpu as pltpu

_LANE = 128
_DEFAULT_TB = 128          # batch tile rows for the gridded path (mult. of 8)
_VMEM_LIMIT = 32 * 1024 * 1024   # explicit scoped-VMEM; safe on v5e/v6e/v7x (64 MiB phys on v7x)


def _refined_reciprocal(d):
    # EUP approximate reciprocal + one Newton-Raphson step (VPU mul/sub).
    inv = pl.reciprocal(d, approx=True)
    return inv * (2.0 - d * inv)


# ---------------------------------------------------------------------------
# Single-shot kernel (small B): everything in one VMEM-resident call.
# ---------------------------------------------------------------------------
def _single_shot_kernel(x_ref, w1_ref, b1_ref, aw_ref, ab_ref, w2_ref, b2_ref,
                        out_ref):
    x = x_ref[...]                                                      # (B, F)

    # fc1 + relu (MXU matmul, f32 accumulate); H is lane-padded to 128.
    h = jnp.dot(x, w1_ref[...], preferred_element_type=jnp.float32)    # (B, Hp)
    h = jnp.maximum(h + b1_ref[...], 0.0)

    # Attention logits: VPU multiply + lane reduction (keeps the N=1
    # projection off the MXU).  Padded lanes contribute exactly 0.
    logit = jnp.sum(h * aw_ref[...], axis=-1, keepdims=True)           # (B, 1)
    # tanh bounds logits to [-1, 1] -> exp cannot overflow; no max pass.
    e = jnp.exp(jnp.tanh(logit + ab_ref[...]))                         # (B, Hp)

    # Softmax over the batch axis (dim=0), per hidden column.
    denom = jnp.sum(e, axis=0, keepdims=True)                          # (1, Hp)
    weights = e * _refined_reciprocal(denom)

    # Weighted hidden + fc2 (second MXU matmul), true-C output.
    att = weights * h
    out = jnp.dot(att, w2_ref[...], preferred_element_type=jnp.float32)
    out_ref[...] = out + b2_ref[...]                                   # (B, C)


# ---------------------------------------------------------------------------
# Tiled large-B path: two passes over batch tiles, recomputing h in pass 2.
# ---------------------------------------------------------------------------
def _pass1_kernel(x_ref, w1_ref, b1_ref, aw_ref, ab_ref, sum_ref, *,
                  b_total, tb):
    i = pl.program_id(0)

    @pl.when(i == 0)
    def _():
        sum_ref[...] = jnp.zeros_like(sum_ref)

    h = jnp.dot(x_ref[...], w1_ref[...], preferred_element_type=jnp.float32)
    h = jnp.maximum(h + b1_ref[...], 0.0)
    logit = jnp.sum(h * aw_ref[...], axis=-1, keepdims=True)
    e = jnp.exp(jnp.tanh(logit + ab_ref[...]))                         # (TB, Hp)

    # Mask zero-padded batch rows out of the softmax denominator.
    row = i * tb + jax.lax.broadcasted_iota(jnp.int32, e.shape, 0)
    e = jnp.where(row < b_total, e, 0.0)

    sum_ref[...] += jnp.sum(e, axis=0, keepdims=True)                  # (1, Hp)


def _pass2_kernel(x_ref, w1_ref, b1_ref, aw_ref, ab_ref, sum_ref, w2_ref,
                  b2_ref, out_ref):
    h = jnp.dot(x_ref[...], w1_ref[...], preferred_element_type=jnp.float32)
    h = jnp.maximum(h + b1_ref[...], 0.0)
    logit = jnp.sum(h * aw_ref[...], axis=-1, keepdims=True)
    e = jnp.exp(jnp.tanh(logit + ab_ref[...]))

    weights = e * _refined_reciprocal(sum_ref[...])
    att = weights * h
    out = jnp.dot(att, w2_ref[...], preferred_element_type=jnp.float32)
    out_ref[...] = out + b2_ref[...]                                   # (TB, C)


# ---------------------------------------------------------------------------
# Wrappers
# ---------------------------------------------------------------------------
def _pad_params(w1_t, b1, attn_w, attn_b, w2_t, b2):
    """Zero-pad the hidden dim to a multiple of 128 (zeros propagate exactly)."""
    f_dim, h_dim = w1_t.shape
    _, c_dim = w2_t.shape
    h_pad = ((h_dim + _LANE - 1) // _LANE) * _LANE

    w1_p = jnp.zeros((f_dim, h_pad), jnp.float32).at[:, :h_dim].set(w1_t)
    b1_p = jnp.zeros((1, h_pad), jnp.float32).at[:, :h_dim].set(b1.reshape(1, -1))
    aw_p = jnp.zeros((1, h_pad), jnp.float32).at[:, :h_dim].set(attn_w.reshape(1, -1))
    ab_p = jnp.zeros((1, h_pad), jnp.float32).at[:, :h_dim].set(attn_b.reshape(1, -1))
    w2_p = jnp.zeros((h_pad, c_dim), jnp.float32).at[:h_dim, :].set(w2_t)
    b2_p = b2.reshape(1, -1).astype(jnp.float32)
    return w1_p, b1_p, aw_p, ab_p, w2_p, b2_p, h_pad


def _forward_single(x, params):
    w1_p, b1_p, aw_p, ab_p, w2_p, b2_p, h_pad = params
    b_dim, f_dim = x.shape
    c_dim = w2_p.shape[1]

    vmem = pl.BlockSpec(memory_space=pltpu.MemorySpace.VMEM)
    flops = 2 * b_dim * (f_dim * h_pad + h_pad * c_dim)
    bytes_acc = 4 * (b_dim * (f_dim + c_dim) + w1_p.size + w2_p.size + 4 * h_pad)

    return pl.pallas_call(
        _single_shot_kernel,
        out_shape=jax.ShapeDtypeStruct((b_dim, c_dim), jnp.float32),
        in_specs=[vmem] * 7,
        out_specs=vmem,
        compiler_params=pltpu.CompilerParams(vmem_limit_bytes=_VMEM_LIMIT),
        cost_estimate=pl.CostEstimate(flops=flops,
                                      transcendentals=2 * b_dim * h_pad,
                                      bytes_accessed=bytes_acc),
    )(x, w1_p, b1_p, aw_p, ab_p, w2_p, b2_p)


def _forward_tiled(x, params, tb):
    w1_p, b1_p, aw_p, ab_p, w2_p, b2_p, h_pad = params
    b_dim, f_dim = x.shape
    c_dim = w2_p.shape[1]

    n_tiles = pl.cdiv(b_dim, tb)
    b_padded = n_tiles * tb
    if b_padded != b_dim:
        x = jnp.zeros((b_padded, f_dim), x.dtype).at[:b_dim, :].set(x)

    const2 = lambda i: (0, 0)                    # resident weights: no re-DMA
    x_spec = pl.BlockSpec((tb, f_dim), lambda i: (i, 0))
    weight_specs = [
        pl.BlockSpec(w1_p.shape, const2),
        pl.BlockSpec(b1_p.shape, const2),
        pl.BlockSpec(aw_p.shape, const2),
        pl.BlockSpec(ab_p.shape, const2),
    ]

    # Pass 1: accumulate the (1, H_pad) sum-of-exp across batch tiles.
    sumexp = pl.pallas_call(
        functools.partial(_pass1_kernel, b_total=b_dim, tb=tb),
        out_shape=jax.ShapeDtypeStruct((1, h_pad), jnp.float32),
        grid=(n_tiles,),
        in_specs=[x_spec] + weight_specs,
        out_specs=pl.BlockSpec((1, h_pad), const2),
        compiler_params=pltpu.CompilerParams(
            dimension_semantics=("arbitrary",),
            vmem_limit_bytes=_VMEM_LIMIT),
        cost_estimate=pl.CostEstimate(
            flops=2 * b_padded * f_dim * h_pad,
            transcendentals=2 * b_padded * h_pad,
            bytes_accessed=4 * (b_padded * f_dim + w1_p.size + 4 * h_pad)),
    )(x, w1_p, b1_p, aw_p, ab_p)

    # Pass 2: recompute h per tile (cheaper than caching it to HBM), apply
    # the batch-softmax weights, and run fc2.  Fully parallel over tiles.
    out = pl.pallas_call(
        _pass2_kernel,
        out_shape=jax.ShapeDtypeStruct((b_padded, c_dim), jnp.float32),
        grid=(n_tiles,),
        in_specs=[x_spec] + weight_specs + [
            pl.BlockSpec((1, h_pad), const2),
            pl.BlockSpec(w2_p.shape, const2),
            pl.BlockSpec(b2_p.shape, const2),
        ],
        out_specs=pl.BlockSpec((tb, c_dim), lambda i: (i, 0)),
        compiler_params=pltpu.CompilerParams(
            dimension_semantics=("parallel",),
            vmem_limit_bytes=_VMEM_LIMIT),
        cost_estimate=pl.CostEstimate(
            flops=2 * b_padded * (f_dim * h_pad + h_pad * c_dim),
            transcendentals=2 * b_padded * h_pad,
            bytes_accessed=4 * (b_padded * (f_dim + c_dim)
                                + w1_p.size + w2_p.size + 5 * h_pad)),
    )(x, w1_p, b1_p, aw_p, ab_p, sumexp, w2_p, b2_p)

    return out[:b_dim]


def attention_net_forward(x, w1_t, b1, attn_w, attn_b, w2_t, b2,
                          tb=_DEFAULT_TB):
    """x: (B, F); w1_t: (F, H); b1: (H,); attn_w: (H, 1); attn_b: (H,);
    w2_t: (H, C); b2: (C,).  Linear weights are passed pre-transposed."""
    params = _pad_params(w1_t, b1, attn_w, attn_b, w2_t, b2)
    if x.shape[0] <= tb:
        return _forward_single(x, params)
    return _forward_tiled(x, params, tb)


# ---------------------------------------------------------------------------
# Reference + test
# ---------------------------------------------------------------------------
def _reference(x, w1_t, b1, attn_w, attn_b, w2_t, b2):
    h = jax.nn.relu(x @ w1_t + b1)
    w = jnp.tanh(h @ attn_w + attn_b)          # (B,1)+(H,) -> (B,H)
    w = jax.nn.softmax(w, axis=0)
    return (w * h) @ w2_t + b2


if __name__ == "__main__":
    F_DIM, H_DIM, C_DIM = 16, 32, 8

    key = jax.random.PRNGKey(0)
    k1, k2, k3, k4, k5, k6, kx1, kx2 = jax.random.split(key, 8)

    # fc1: nn.Linear(F, H) -> weight (H, F), bias (H,).  Stored transposed.
    w1_t = jax.random.normal(k1, (F_DIM, H_DIM), jnp.float32) * 0.1
    b1 = jax.random.normal(k2, (H_DIM,), jnp.float32) * 0.1
    # attention parameters (zeros in __init__; random here for a
    # non-degenerate test).
    attn_w = jax.random.normal(k3, (H_DIM, 1), jnp.float32) * 0.1
    attn_b = jax.random.normal(k4, (H_DIM,), jnp.float32) * 0.1
    # fc2: nn.Linear(H, C) -> weight (C, H), bias (C,).  Stored transposed.
    w2_t = jax.random.normal(k5, (H_DIM, C_DIM), jnp.float32) * 0.1
    b2 = jax.random.normal(k6, (C_DIM,), jnp.float32) * 0.1

    # Small batch -> single-shot VMEM-resident kernel.
    x_small = jax.random.normal(kx1, (8, F_DIM), jnp.float32)
    out_small = jax.block_until_ready(
        attention_net_forward(x_small, w1_t, b1, attn_w, attn_b, w2_t, b2))
    ref_small = _reference(x_small, w1_t, b1, attn_w, attn_b, w2_t, b2)
    assert jnp.allclose(out_small, ref_small, atol=1e-3, rtol=1e-3), \
        "small-batch mismatch vs reference"

    # Larger, non-tile-multiple batch -> tiled two-pass path (exercises the
    # resident-weight specs, batch masking and cross-tile softmax reduction).
    x_big = jax.random.normal(kx2, (300, F_DIM), jnp.float32)
    out_big = jax.block_until_ready(
        attention_net_forward(x_big, w1_t, b1, attn_w, attn_b, w2_t, b2))
    ref_big = _reference(x_big, w1_t, b1, attn_w, attn_b, w2_t, b2)
    assert jnp.allclose(out_big, ref_big, atol=1e-3, rtol=1e-3), \
        "tiled-batch mismatch vs reference"

    print("KERNEL_OK")
</pallas_src>

<mosaic_0001>
module attributes {stable_mosaic.version = 11 : i64} {
  func.func @_single_shot_kernel(%arg0: memref<8x16xf32, #tpu.memory_space<vmem>>, %arg1: memref<16x128xf32, #tpu.memory_space<vmem>>, %arg2: memref<1x128xf32, #tpu.memory_space<vmem>>, %arg3: memref<1x128xf32, #tpu.memory_space<vmem>>, %arg4: memref<1x128xf32, #tpu.memory_space<vmem>>, %arg5: memref<128x8xf32, #tpu.memory_space<vmem>>, %arg6: memref<1x8xf32, #tpu.memory_space<vmem>>, %arg7: memref<8x8xf32, #tpu.memory_space<vmem>>) attributes {dimension_semantics = [], scalar_prefetch = 0 : i64, scratch_operands = 0 : i64, tpu.core_type = #tpu.core_type<tc>} {
    %c0 = arith.constant 0 : index
    %c0_0 = arith.constant 0 : index
    %0 = vector.load %arg0[%c0, %c0_0] : memref<8x16xf32, #tpu.memory_space<vmem>>, vector<8x16xf32>
    %c0_1 = arith.constant 0 : index
    %c0_2 = arith.constant 0 : index
    %1 = vector.load %arg1[%c0_1, %c0_2] : memref<16x128xf32, #tpu.memory_space<vmem>>, vector<16x128xf32>
    %cst = arith.constant dense<0.000000e+00> : vector<8x128xf32>
    %2 = tpu.matmul %0, %1, %cst {dimension_numbers = #tpu.dot_dimension_numbers<[1], [0], [0], [1], [0, 0, 1, 1], [], []>} : vector<8x16xf32>, vector<16x128xf32>, vector<8x128xf32> -> vector<8x128xf32>
    %c0_3 = arith.constant 0 : index
    %c0_4 = arith.constant 0 : index
    %3 = vector.load %arg2[%c0_3, %c0_4] : memref<1x128xf32, #tpu.memory_space<vmem>>, vector<1x128xf32>
    %4 = vector.broadcast %3 : vector<1x128xf32> to vector<8x128xf32>
    %5 = arith.addf %2, %4 : vector<8x128xf32>
    %cst_5 = arith.constant 0.000000e+00 : f32
    %6 = vector.broadcast %cst_5 : f32 to vector<8x128xf32>
    %7 = arith.maximumf %5, %6 : vector<8x128xf32>
    %c0_6 = arith.constant 0 : index
    %c0_7 = arith.constant 0 : index
    %8 = vector.load %arg3[%c0_6, %c0_7] : memref<1x128xf32, #tpu.memory_space<vmem>>, vector<1x128xf32>
    %9 = vector.broadcast %8 : vector<1x128xf32> to vector<8x128xf32>
    %10 = arith.mulf %7, %9 : vector<8x128xf32>
    %cst_8 = arith.constant dense<0.000000e+00> : vector<8xf32>
    %11 = vector.multi_reduction <add>, %10, %cst_8 [1] : vector<8x128xf32> to vector<8xf32>
    %12 = vector.shape_cast %11 : vector<8xf32> to vector<8x1xf32>
    %c0_9 = arith.constant 0 : index
    %c0_10 = arith.constant 0 : index
    %13 = vector.load %arg4[%c0_9, %c0_10] : memref<1x128xf32, #tpu.memory_space<vmem>>, vector<1x128xf32>
    %14 = vector.broadcast %12 : vector<8x1xf32> to vector<8x128xf32>
    %15 = vector.broadcast %13 : vector<1x128xf32> to vector<8x128xf32>
    %16 = arith.addf %14, %15 : vector<8x128xf32>
    %17 = math.tanh %16 : vector<8x128xf32>
    %18 = math.exp %17 : vector<8x128xf32>
    %cst_11 = arith.constant dense<0.000000e+00> : vector<128xf32>
    %19 = vector.multi_reduction <add>, %18, %cst_11 [0] : vector<8x128xf32> to vector<128xf32>
    %20 = vector.shape_cast %19 : vector<128xf32> to vector<1x128xf32>
    %21 = tpu.reciprocal %20 {approx = true} : vector<1x128xf32> -> vector<1x128xf32>
    %22 = arith.mulf %20, %21 : vector<1x128xf32>
    %cst_12 = arith.constant 2.000000e+00 : f32
    %23 = vector.broadcast %cst_12 : f32 to vector<1x128xf32>
    %24 = arith.subf %23, %22 : vector<1x128xf32>
    %25 = arith.mulf %21, %24 : vector<1x128xf32>
    %26 = vector.broadcast %25 : vector<1x128xf32> to vector<8x128xf32>
    %27 = arith.mulf %18, %26 : vector<8x128xf32>
    %28 = arith.mulf %27, %7 : vector<8x128xf32>
    %c0_13 = arith.constant 0 : index
    %c0_14 = arith.constant 0 : index
    %29 = vector.load %arg5[%c0_13, %c0_14] : memref<128x8xf32, #tpu.memory_space<vmem>>, vector<128x8xf32>
    %cst_15 = arith.constant dense<0.000000e+00> : vector<8x8xf32>
    %30 = tpu.matmul %28, %29, %cst_15 {dimension_numbers = #tpu.dot_dimension_numbers<[1], [0], [0], [1], [0, 0, 1, 1], [], []>} : vector<8x128xf32>, vector<128x8xf32>, vector<8x8xf32> -> vector<8x8xf32>
    %c0_16 = arith.constant 0 : index
    %c0_17 = arith.constant 0 : index
    %31 = vector.load %arg6[%c0_16, %c0_17] : memref<1x8xf32, #tpu.memory_space<vmem>>, vector<1x8xf32>
    %32 = vector.broadcast %31 : vector<1x8xf32> to vector<8x8xf32>
    %33 = arith.addf %30, %32 : vector<8x8xf32>
    %c0_18 = arith.constant 0 : index
    %c0_19 = arith.constant 0 : index
    %34 = vector.load %arg7[%c0_18, %c0_19] : memref<8x8xf32, #tpu.memory_space<vmem>>, vector<8x8xf32>
    tpu.vector_store %arg7[%c0_18, %c0_19], %33 {strides = array<i32>} : memref<8x8xf32, #tpu.memory_space<vmem>>, vector<8x8xf32>,
    return
  }
}

</mosaic_0001>

<llo_original>
// kernel: tpu_custom_call.1
$region0: #{tpu_custom_call.1}
  #allocation0 [shape = 'u32[]', space=smem, size = 0x4, offset = 0x4, fixed_abs, tag = 'smem constant byte address 0x4 - core index']
  #allocation1 [shape = 'u32[72,128]{1,0:T(1,128)}', space=vmem, size = 0x9000, scoped, tag = 'internal scratch']
  %s0 = inlined_call_operand.vmem [shape: f32[8,16], index: 0, kind: input, shape index: {}]
  %s1 = inlined_call_operand.vmem [shape: f32[16,128], index: 1, kind: input, shape index: {}]
  %s2 = inlined_call_operand.vmem [shape: f32[1,128], index: 2, kind: input, shape index: {}]
  %s3 = inlined_call_operand.vmem [shape: f32[1,128], index: 3, kind: input, shape index: {}]
  %s4 = inlined_call_operand.vmem [shape: f32[1,128], index: 4, kind: input, shape index: {}]
  %s5 = inlined_call_operand.vmem [shape: f32[128,8], index: 5, kind: input, shape index: {}]
  %s6 = inlined_call_operand.vmem [shape: f32[1,8], index: 6, kind: input, shape index: {}]
  %s7 = inlined_call_operand.hbm [shape: f32[8,8], index: 7, kind: output, shape index: {}]
  %s8 = sld [smem:[#allocation0]]
  $region38: #{tpu_custom_call.1} parent=0
    _
  %s10 = ssub.s32 1, %s8
  %s11 = scalar_select 0, %s10, %s8
  $region1: #{tpu_custom_call.1} parent=0
    #allocation2 [shape = 'u8[4096]{0}', space=vmem, size = 0x1000, scoped, tag = 'output window, operand 0, single buffered']
    #allocation3 [shape = 's32[1]{0}', space=sflag, size = 0x4, scoped, tag = 'scoped memory for tpu_custom_call.1']
    %12 = vsyncpa [#allocation3], 0
    // Predicated region
    $region2: #{tpu_custom_call.1} parent=1 // pred_check
      _
    $region3: #{tpu_custom_call.1} parent=1 // pred_check_branch
      %14 = sbr.rel (0) target = $region5
    $region4: #{tpu_custom_call.1} parent=1 // pred_region
      _
    $region5: #{tpu_custom_call.1} parent=1 // pred_fallthru
      _
    // Predicated region
    $region6: #{tpu_custom_call.1} parent=1 // pred_check
      _
    $region7: #{tpu_custom_call.1} parent=1 // pred_check_branch
      %16 = sbr.rel (0) target = $region9
    $region8: #{tpu_custom_call.1} parent=1 // pred_region
      _
    $region9: #{tpu_custom_call.1} parent=1 // pred_fallthru
      _
    // Predicated region
    $region10: #{tpu_custom_call.1} parent=1 // pred_check
      _
    $region11: #{tpu_custom_call.1} parent=1 // pred_check_branch
      %18 = sbr.rel (0) target = $region13
    $region12: #{tpu_custom_call.1} parent=1 // pred_region
      _
    $region13: #{tpu_custom_call.1} parent=1 // pred_fallthru
      _
    // Predicated region
    $region14: #{tpu_custom_call.1} parent=1 // pred_check
      _
    $region15: #{tpu_custom_call.1} parent=1 // pred_check_branch
      %20 = sbr.rel (0) target = $region17
    $region16: #{tpu_custom_call.1} parent=1 // pred_region
      _
    $region17: #{tpu_custom_call.1} parent=1 // pred_fallthru
      _
    // Predicated region
    $region18: #{tpu_custom_call.1} parent=1 // pred_check
      _
    $region19: #{tpu_custom_call.1} parent=1 // pred_check_branch
      %22 = sbr.rel (0) target = $region21
    $region20: #{tpu_custom_call.1} parent=1 // pred_region
      _
    $region21: #{tpu_custom_call.1} parent=1 // pred_fallthru
      _
    // Predicated region
    $region22: #{tpu_custom_call.1} parent=1 // pred_check
      _
    $region23: #{tpu_custom_call.1} parent=1 // pred_check_branch
      %24 = sbr.rel (0) target = $region25
    $region24: #{tpu_custom_call.1} parent=1 // pred_region
      _
    $region25: #{tpu_custom_call.1} parent=1 // pred_fallthru
      _
    // Predicated region
    $region26: #{tpu_custom_call.1} parent=1 // pred_check
      _
    $region27: #{tpu_custom_call.1} parent=1 // pred_check_branch
      %26 = sbr.rel (0) target = $region29
    $region28: #{tpu_custom_call.1} parent=1 // pred_region
      _
    $region29: #{tpu_custom_call.1} parent=1 // pred_fallthru
      _
    %v27 = vld [vmem:[%s0] sm:$0xff]
    %v28 = vld [vmem:[%s1] sm:$0xff]
    %v29 = vld [vmem:[%s1 + $0x8] sm:$0xff]
    %v30 = vld [vmem:[%s2] sm:$0x1]
    %v32 = vperm.slane %v30, 0
    %vm34 = vcmask 130048
    %v36 = vsel %vm34, %v27, 0
    %38 = vmatpush.msra.mxu0 0.0
    %39 = vmatpush.msra.mxu0 0.0
    %40 = vmatpush.msra.mxu0 0.0
    %41 = vmatpush.msra.mxu0 0.0
    %42 = vmatpush.msra.mxu0 0.0
    %43 = vmatpush.msra.mxu0 0.0
    %44 = vmatpush.msra.mxu0 0.0
    %45 = vmatpush.msra.mxu0 0.0
    %46 = vmatpush.msra.mxu0 0.0
    %47 = vmatpush.msra.mxu0 0.0
    %48 = vmatpush.msra.mxu0 0.0
    %49 = vmatpush.msra.mxu0 0.0
    %50 = vmatpush.msra.mxu0 0.0
    %51 = vmatpush.msra.mxu0 0.0
    %52 = vmatpush.msra.mxu0 %v29
    %53 = vmatpush.msra.mxu0 %v28
    %54 = vmatmul.f32.gmra.mxu0 %v36
    %v55 = vpop.f32.mrf.mxu0
    %v56 = vadd.f32 %v32, %v55
    %57 = vdwg.mxu0
    %v58 = vmax.f32 %v56, 0.0
    %v59 = vld [vmem:[%s3] sm:$0x1]
    %v61 = vperm.slane %v59, 0
    %v63 = vmul.f32 %v58, %v61
    %64 = vadd.xlane.f32.xlu0 %v63
    %v65 = vpop.xlane.xlu0 %64
    %v66 = vld [vmem:[%s4] sm:$0x1]
    %v68 = vperm.slane %v66, 0
    %v70 = vadd.f32 %v65, %v68
    %v71 = vtanh.pop %v70
    %v72 = vmul.f32 %v71, 1.442695
    %v73 = vpow.pop %v72
    %v74 = vrot.slane %v73, 4
    %v75 = vadd.f32 %v73, %v74
    %v76 = vrot.slane %v75, 2
    %v77 = vadd.f32 %v75, %v76
    %v78 = vrot.slane %v77, 1
    %v79 = vadd.f32 %v77, %v78
    %v80 = vrcp.pop %v79
    %v81 = vmul.f32 %v79, %v80
    %v82 = vsub.f32 2.0, %v81
    %v83 = vmul.f32 %v80, %v82
    %v84 = vmul.f32 %v73, %v83
    %v85 = vmul.f32 %v84, %v58
    %v86 = vld [vmem:[%s5] sm:$0xff]
    %v87 = vld [vmem:[%s5 + $0x8] sm:$0xff]
    %v88 = vld [vmem:[%s5 + $0x10] sm:$0xff]
    %v89 = vld [vmem:[%s5 + $0x18] sm:$0xff]
    %v90 = vld [vmem:[%s5 + $0x20] sm:$0xff]
    %v91 = vld [vmem:[%s5 + $0x28] sm:$0xff]
    %v92 = vld [vmem:[%s5 + $0x30] sm:$0xff]
    %v93 = vld [vmem:[%s5 + $0x38] sm:$0xff]
    %v94 = vld [vmem:[%s5 + $0x40] sm:$0xff]
    %v95 = vld [vmem:[%s5 + $0x48] sm:$0xff]
    %v96 = vld [vmem:[%s5 + $0x50] sm:$0xff]
    %v97 = vld [vmem:[%s5 + $0x58] sm:$0xff]
    %v98 = vld [vmem:[%s5 + $0x60] sm:$0xff]
    %v99 = vld [vmem:[%s5 + $0x68] sm:$0xff]
    %v100 = vld [vmem:[%s5 + $0x70] sm:$0xff]
    %v101 = vld [vmem:[%s5 + $0x78] sm:$0xff]
    %v102 = vld [vmem:[%s6] sm:$0x1]
    %v104 = vperm.slane %v102, 0
    %106 = vmatpush.msra.mxu0 %v101
    %107 = vmatpush.msra.mxu0 %v100
    %108 = vmatpush.msra.mxu0 %v99
    %109 = vmatpush.msra.mxu0 %v98
    %110 = vmatpush.msra.mxu0 %v97
    %111 = vmatpush.msra.mxu0 %v96
    %112 = vmatpush.msra.mxu0 %v95
    %113 = vmatpush.msra.mxu0 %v94
    %114 = vmatpush.msra.mxu0 %v93
    %115 = vmatpush.msra.mxu0 %v92
    %116 = vmatpush.msra.mxu0 %v91
    %117 = vmatpush.msra.mxu0 %v90
    %118 = vmatpush.msra.mxu0 %v89
    %119 = vmatpush.msra.mxu0 %v88
    %120 = vmatpush.msra.mxu0 %v87
    %121 = vmatpush.msra.mxu0 %v86
    %122 = vmatmul.f32.gmra.mxu0 %v85
    %v123 = vpop.f32.mrf.mxu0
    %v124 = vadd.f32 %v104, %v123
    %125 = vdwg.mxu0
    %vm126 = vcmask 64512
    %127 = vst.msk [vmem:[#allocation2] sm:$0xff] %vm126, %v124
    // Predicated region
    $region30: #{tpu_custom_call.1} parent=1 // pred_check
      _
    $region31: #{tpu_custom_call.1} parent=1 // pred_check_branch
      %129 = sbr.rel (0) target = $region33
    $region32: #{tpu_custom_call.1} parent=1 // pred_region
      %131 = vsyncadd [#allocation3], 0
      %s133 = sshll.u32 [#allocation2], 4
      %s134 = int_to_ptr.vmem [resolvable:$true] %s133
      %s135 = sshll.u32 %s7, 4
      %s136 = int_to_ptr.hbm [resolvable:$true] %s135
      %138 = dma.vmem_to_hbm [thread:$0]  %s134, 128, %s136, [#allocation3]
    $region33: #{tpu_custom_call.1} parent=1 // pred_fallthru
      _
    // Predicated region
    $region34: #{tpu_custom_call.1} parent=1 // pred_check
      _
    $region35: #{tpu_custom_call.1} parent=1 // pred_check_branch
      %140 = sbr.rel (0) target = $region37
    $region36: #{tpu_custom_call.1} parent=1 // pred_region
      %142 = dma.done [#allocation3], 128
    $region37: #{tpu_custom_call.1} parent=1 // pred_fallthru
      _
    %143 = vsyncpa [#allocation3], 1

</llo_original>
